<compile_context>
chip_gen: v5e
topology: v5e:2x2
jax: 0.10.0
libtpu: 0.0.40
codegen_flags: <defaults>
</compile_context>

<pallas_src>
import functools

import jax
import jax.numpy as jnp
from jax.experimental import pallas as pl
from jax.experimental.pallas import tpu as pltpu


def _round_up(x, m):
    return ((x + m - 1) // m) * m


def _cdiv(a, b):
    return (a + b - 1) // b


def _eldice_partial_kernel(pred_ref, target_ref, out_ref, pt_acc, sq_acc, *,
                           kb, hw, mask_lanes, max_unrolled_lane_tiles=64):
    """Accumulate per-row partial sums over a stream of (TR, TK) tiles.

    Grid = (S, RB, KB): S = HW half-split ("parallel"), RB = row blocks
    ("parallel"), KB = HW tiles per split ("arbitrary", innermost).
    Emits per-row [sum(p*t), sum(p*p + t*t)] for its (split, row-block).
    """
    k = pl.program_id(2)

    @pl.when(k == 0)
    def _():
        pt_acc[...] = jnp.zeros_like(pt_acc)
        sq_acc[...] = jnp.zeros_like(sq_acc)

    p = pred_ref[...].astype(jnp.float32)    # (TR, TK)
    t = target_ref[...].astype(jnp.float32)  # (TR, TK)

    if mask_lanes:
        # The last global HW tile sticks out past HW: zero the invalid lanes so
        # out-of-bounds garbage left by the boundary DMA never reaches the sums.
        s = pl.program_id(0)
        col = (s * kb + k) * p.shape[-1] + jax.lax.broadcasted_iota(
            jnp.int32, p.shape, 1)
        valid = col < hw
        p = jnp.where(valid, p, 0.0)
        t = jnp.where(valid, t, 0.0)

    pt = p * t
    sq = p * p + t * t

    nlt = p.shape[-1] // 128
    if nlt <= max_unrolled_lane_tiles:
        # Lane-dense accumulation: fold 128-lane chunks into the (TR, 128)
        # accumulators with plain VALU adds; the single cross-lane reduce
        # happens once per row block in the finalize branch below.
        a_pt = pt_acc[...]
        a_sq = sq_acc[...]
        for j in range(nlt):
            sl = slice(j * 128, (j + 1) * 128)
            a_pt = a_pt + pt[:, sl]
            a_sq = a_sq + sq[:, sl]
        pt_acc[...] = a_pt
        sq_acc[...] = a_sq
    else:
        # Very wide tiles (few rows): let Mosaic do the cross-lane reduction and
        # accumulate into lane 0 only (the other 127 lanes stay zero).
        pt_acc[:, 0:1] += jnp.sum(pt, axis=-1, keepdims=True)
        sq_acc[:, 0:1] += jnp.sum(sq, axis=-1, keepdims=True)

    @pl.when(k == pl.num_programs(2) - 1)
    def _():
        out_ref[:, 0:1] = jnp.sum(pt_acc[...], axis=-1, keepdims=True)
        out_ref[:, 1:2] = jnp.sum(sq_acc[...], axis=-1, keepdims=True)


def eldice_loss(pred, target, *, tile_bytes_per_input=4 * 1024 * 1024):
    """ELDiceLoss forward. pred/target: (N, C, H, W). Returns scalar float32.

    Inputs may be float32 or bfloat16 — tiles are upcast to f32 in-kernel, and
    the tile element budget is dtype-aware so bf16 keeps the same DMA bytes per
    grid step (halving total HBM traffic for this bandwidth-bound op).
    """
    N, C, H, W = pred.shape
    R = N * C
    HW = H * W
    smooth = 1.0

    pred2 = pred.reshape(R, HW)       # free row-major reshape, no copy
    target2 = target.reshape(R, HW)

    isz = max(jnp.dtype(pred.dtype).itemsize, jnp.dtype(target.dtype).itemsize)
    tile_elems = max(8 * 128, tile_bytes_per_input // isz)
    sub = max(8, 32 // isz)           # sublane packing granularity for this dtype

    # ---- Row (sublane) tiling: ~<=256 rows per block, and >=2 row blocks
    # whenever R allows so v7x's two TensorCores both get a "parallel" block. ----
    if R <= 8:
        tr = R                        # block == full row dim (allowed even if < 8)
    else:
        rb_target = max(2, _cdiv(R, 256))
        tr = min(_round_up(_cdiv(R, rb_target), 8), (R // 8) * 8)
    rb = _cdiv(R, tr)

    # ---- Lane (HW) tiling: no jnp.pad HBM round-trip. Prefer a tk that divides
    # HW (no masking needed); otherwise mask the ragged tail in-kernel. ----
    mask_lanes = False
    if HW < 128:
        # TODO(synk): tiny-spatial fallback still pads (<128 lanes, negligible).
        pred2 = jnp.pad(pred2, ((0, 0), (0, 128 - HW)))
        target2 = jnp.pad(target2, ((0, 0), (0, 128 - HW)))
        tk = 128
        kb_total = 1
    else:
        lane_budget = max(
            128, (tile_elems // _round_up(max(tr, 1), sub)) // 128 * 128)
        max_lanes = (min(HW, lane_budget) // 128) * 128
        tk = 0
        if HW % 128 == 0:
            for cand in range(max_lanes, 127, -128):
                if HW % cand == 0:
                    tk = cand
                    break
        if tk == 0:
            tk = max_lanes
            mask_lanes = (HW % tk) != 0
        kb_total = _cdiv(HW, tk)

    # ---- Optionally split the HW reduction into two "parallel" halves so a
    # single-row-block problem (R <= 8) still feeds both v7x TensorCores. ----
    s_dim, kb = 1, kb_total
    if rb == 1 and kb_total >= 2 and kb_total % 2 == 0:
        s_dim, kb = 2, kb_total // 2

    kernel = functools.partial(_eldice_partial_kernel, kb=kb, hw=HW,
                               mask_lanes=mask_lanes)

    # VMEM: 2 inputs x 2 pipeline buffers x <=4 MiB tile = <=16 MiB + <=1 MiB of
    # scratch/output -> fits the explicit 32 MiB limit on every generation
    # (v5e/v6e: 128 MiB physical VMEM, v7x: 64 MiB physical).
    partials = pl.pallas_call(
        kernel,
        out_shape=jax.ShapeDtypeStruct((s_dim, R, 2), jnp.float32),
        grid_spec=pltpu.PrefetchScalarGridSpec(
            num_scalar_prefetch=0,
            grid=(s_dim, rb, kb),
            in_specs=[
                pl.BlockSpec((tr, tk), lambda s, r, k: (r, s * kb + k)),
                pl.BlockSpec((tr, tk), lambda s, r, k: (r, s * kb + k)),
            ],
            out_specs=pl.BlockSpec((None, tr, 2), lambda s, r, k: (s, r, 0)),
            scratch_shapes=[
                pltpu.VMEM((tr, 128), jnp.float32),
                pltpu.VMEM((tr, 128), jnp.float32),
            ],
        ),
        compiler_params=pltpu.CompilerParams(
            dimension_semantics=("parallel", "parallel", "arbitrary"),
            vmem_limit_bytes=32 * 1024 * 1024,
        ),
    )(pred2, target2)

    # Tiny O(N*C) epilogue: combine HW halves, per-row dice, channel average,
    # exp-log dice, batch mean, clamp. Matches the PyTorch forward exactly.
    inter = jnp.sum(partials[..., 0], axis=0)        # (R,)
    sqsum = jnp.sum(partials[..., 1], axis=0)        # (R,)
    dice_rows = 2.0 * inter / (sqsum + smooth)
    dice = dice_rows.reshape(N, C).sum(axis=1) / C
    return jnp.clip(jnp.power(-jnp.log(dice + 1e-5), 0.3).mean(), 0.0, 2.0)


def _eldice_loss_ref(pred, target):
    """Pure-JAX reference mirroring the PyTorch forward, for verification."""
    smooth = 1.0
    pred = pred.astype(jnp.float32)
    target = target.astype(jnp.float32)
    inter = jnp.sum(pred * target, axis=(2, 3))           # (N, C)
    p2 = jnp.sum(pred * pred, axis=(2, 3))                # (N, C)
    t2 = jnp.sum(target * target, axis=(2, 3))            # (N, C)
    dice = jnp.sum(2.0 * inter / (p2 + t2 + smooth), axis=1) / pred.shape[1]
    return jnp.clip(jnp.mean(jnp.power(-jnp.log(dice + 1e-5), 0.3)), 0.0, 2.0)


if __name__ == "__main__":
    key = jax.random.PRNGKey(0)
    k1, k2 = jax.random.split(key)

    N, C, H, W = 2, 4, 16, 16
    # pred: sigmoid-like probabilities; target: binary masks (typical dice-loss inputs)
    pred = jax.nn.sigmoid(jax.random.normal(k1, (N, C, H, W), dtype=jnp.float32))
    target = (jax.random.uniform(k2, (N, C, H, W)) > 0.5).astype(jnp.float32)

    loss = jax.block_until_ready(eldice_loss(pred, target))
    ref = jax.block_until_ready(_eldice_loss_ref(pred, target))
    assert jnp.allclose(loss, ref, atol=1e-5, rtol=1e-5), (loss, ref)

    # bf16-input path (halves HBM traffic; kernel upcasts tiles to f32 internally,
    # dtype-aware tiling keeps per-step DMA bytes constant).
    loss_bf16 = jax.block_until_ready(
        eldice_loss(pred.astype(jnp.bfloat16), target.astype(jnp.bfloat16)))
    assert jnp.allclose(loss_bf16, ref, atol=2e-2, rtol=2e-2), (loss_bf16, ref)

    print("KERNEL_OK")
</pallas_src>

<mosaic_0001>
module attributes {stable_mosaic.version = 11 : i64} {
  func.func @_eldice_partial_kernel(%arg0: i32, %arg1: i32, %arg2: i32, %arg3: memref<8x256xf32, #tpu.memory_space<vmem>>, %arg4: memref<8x256xf32, #tpu.memory_space<vmem>>, %arg5: memref<1x8x2xf32, #tpu.memory_space<vmem>>, %arg6: memref<8x128xf32, #tpu.memory_space<vmem>>, %arg7: memref<8x128xf32, #tpu.memory_space<vmem>>) attributes {dimension_semantics = [#tpu.dimension_semantics<parallel>, #tpu.dimension_semantics<parallel>, #tpu.dimension_semantics<arbitrary>], iteration_bounds = array<i64: 1, 1, 1>, scalar_prefetch = 0 : i64, scratch_operands = 2 : i64, tpu.core_type = #tpu.core_type<tc>, window_params = [{transform_indices = @transform_0, window_bounds = array<i64: 8, 256>}, {transform_indices = @transform_1, window_bounds = array<i64: 8, 256>}, {transform_indices = @transform_2, window_bounds = array<i64: 1, 8, 2>}]} {
    %c0_i32 = arith.constant 0 : i32
    %0 = arith.cmpi eq, %arg2, %c0_i32 : i32
    %1 = arith.extui %0 : i1 to i32
    %c0_i32_0 = arith.constant 0 : i32
    %2 = arith.cmpi ne, %1, %c0_i32_0 : i32
    scf.if %2 {
      %cst = arith.constant 0.000000e+00 : f32
      %24 = vector.broadcast %cst : f32 to vector<8x128xf32>
      %c0_14 = arith.constant 0 : index
      %c0_15 = arith.constant 0 : index
      %25 = vector.load %arg6[%c0_14, %c0_15] : memref<8x128xf32, #tpu.memory_space<vmem>>, vector<8x128xf32>
      tpu.vector_store %arg6[%c0_14, %c0_15], %24 {strides = array<i32>} : memref<8x128xf32, #tpu.memory_space<vmem>>, vector<8x128xf32>,
      %cst_16 = arith.constant 0.000000e+00 : f32
      %26 = vector.broadcast %cst_16 : f32 to vector<8x128xf32>
      %c0_17 = arith.constant 0 : index
      %c0_18 = arith.constant 0 : index
      %27 = vector.load %arg7[%c0_17, %c0_18] : memref<8x128xf32, #tpu.memory_space<vmem>>, vector<8x128xf32>
      tpu.vector_store %arg7[%c0_17, %c0_18], %26 {strides = array<i32>} : memref<8x128xf32, #tpu.memory_space<vmem>>, vector<8x128xf32>,
    } else {
    }
    %c0 = arith.constant 0 : index
    %c0_1 = arith.constant 0 : index
    %3 = vector.load %arg3[%c0, %c0_1] : memref<8x256xf32, #tpu.memory_space<vmem>>, vector<8x256xf32>
    %c0_2 = arith.constant 0 : index
    %c0_3 = arith.constant 0 : index
    %4 = vector.load %arg4[%c0_2, %c0_3] : memref<8x256xf32, #tpu.memory_space<vmem>>, vector<8x256xf32>
    %5 = arith.mulf %3, %4 : vector<8x256xf32>
    %6 = arith.mulf %3, %3 : vector<8x256xf32>
    %7 = arith.mulf %4, %4 : vector<8x256xf32>
    %8 = arith.addf %6, %7 : vector<8x256xf32>
    %c0_4 = arith.constant 0 : index
    %c0_5 = arith.constant 0 : index
    %9 = vector.load %arg6[%c0_4, %c0_5] : memref<8x128xf32, #tpu.memory_space<vmem>>, vector<8x128xf32>
    %c0_6 = arith.constant 0 : index
    %c0_7 = arith.constant 0 : index
    %10 = vector.load %arg7[%c0_6, %c0_7] : memref<8x128xf32, #tpu.memory_space<vmem>>, vector<8x128xf32>
    %11 = vector.extract_strided_slice %5 {offsets = [0, 0], sizes = [8, 128], strides = [1, 1]} : vector<8x256xf32> to vector<8x128xf32>
    %12 = arith.addf %9, %11 : vector<8x128xf32>
    %13 = vector.extract_strided_slice %8 {offsets = [0, 0], sizes = [8, 128], strides = [1, 1]} : vector<8x256xf32> to vector<8x128xf32>
    %14 = arith.addf %10, %13 : vector<8x128xf32>
    %15 = vector.extract_strided_slice %5 {offsets = [0, 128], sizes = [8, 128], strides = [1, 1]} : vector<8x256xf32> to vector<8x128xf32>
    %16 = arith.addf %12, %15 : vector<8x128xf32>
    %17 = vector.extract_strided_slice %8 {offsets = [0, 128], sizes = [8, 128], strides = [1, 1]} : vector<8x256xf32> to vector<8x128xf32>
    %18 = arith.addf %14, %17 : vector<8x128xf32>
    %c0_8 = arith.constant 0 : index
    %c0_9 = arith.constant 0 : index
    %19 = vector.load %arg6[%c0_8, %c0_9] : memref<8x128xf32, #tpu.memory_space<vmem>>, vector<8x128xf32>
    tpu.vector_store %arg6[%c0_8, %c0_9], %16 {strides = array<i32>} : memref<8x128xf32, #tpu.memory_space<vmem>>, vector<8x128xf32>,
    %c0_10 = arith.constant 0 : index
    %c0_11 = arith.constant 0 : index
    %20 = vector.load %arg7[%c0_10, %c0_11] : memref<8x128xf32, #tpu.memory_space<vmem>>, vector<8x128xf32>
    tpu.vector_store %arg7[%c0_10, %c0_11], %18 {strides = array<i32>} : memref<8x128xf32, #tpu.memory_space<vmem>>, vector<8x128xf32>,
    %c0_i32_12 = arith.constant 0 : i32
    %21 = arith.cmpi eq, %arg2, %c0_i32_12 : i32
    %22 = arith.extui %21 : i1 to i32
    %c0_i32_13 = arith.constant 0 : i32
    %23 = arith.cmpi ne, %22, %c0_i32_13 : i32
    scf.if %23 {
      %c0_14 = arith.constant 0 : index
      %c0_15 = arith.constant 0 : index
      %24 = vector.load %arg6[%c0_14, %c0_15] : memref<8x128xf32, #tpu.memory_space<vmem>>, vector<8x128xf32>
      %cst = arith.constant dense<0.000000e+00> : vector<8xf32>
      %25 = vector.multi_reduction <add>, %24, %cst [1] : vector<8x128xf32> to vector<8xf32>
      %26 = vector.shape_cast %25 : vector<8xf32> to vector<8x1xf32>
      %c0_16 = arith.constant 0 : index
      %c0_17 = arith.constant 0 : index
      %c0_18 = arith.constant 0 : index
      %27 = vector.load %arg5[%c0_16, %c0_17, %c0_18] : memref<1x8x2xf32, #tpu.memory_space<vmem>>, vector<1x8x1xf32>
      %28 = vector.shape_cast %27 : vector<1x8x1xf32> to vector<8x1xf32>
      %29 = vector.shape_cast %26 : vector<8x1xf32> to vector<1x8x1xf32>
      tpu.vector_store %arg5[%c0_16, %c0_17, %c0_18], %29 {strides = array<i32>} : memref<1x8x2xf32, #tpu.memory_space<vmem>>, vector<1x8x1xf32>,
      %c0_19 = arith.constant 0 : index
      %c0_20 = arith.constant 0 : index
      %30 = vector.load %arg7[%c0_19, %c0_20] : memref<8x128xf32, #tpu.memory_space<vmem>>, vector<8x128xf32>
      %cst_21 = arith.constant dense<0.000000e+00> : vector<8xf32>
      %31 = vector.multi_reduction <add>, %30, %cst_21 [1] : vector<8x128xf32> to vector<8xf32>
      %32 = vector.shape_cast %31 : vector<8xf32> to vector<8x1xf32>
      %c0_22 = arith.constant 0 : index
      %c0_23 = arith.constant 0 : index
      %c1 = arith.constant 1 : index
      %33 = vector.load %arg5[%c0_22, %c0_23, %c1] : memref<1x8x2xf32, #tpu.memory_space<vmem>>, vector<1x8x1xf32>
      %34 = vector.shape_cast %33 : vector<1x8x1xf32> to vector<8x1xf32>
      %35 = vector.shape_cast %32 : vector<8x1xf32> to vector<1x8x1xf32>
      tpu.vector_store %arg5[%c0_22, %c0_23, %c1], %35 {strides = array<i32>} : memref<1x8x2xf32, #tpu.memory_space<vmem>>, vector<1x8x1xf32>,
    } else {
    }
    return
  }
  func.func @transform_0(%arg0: i32, %arg1: i32, %arg2: i32) -> (i32, i32) {
    %c1_i32 = arith.constant 1 : i32
    %0 = arith.muli %arg0, %c1_i32 : i32
    %1 = arith.addi %0, %arg2 : i32
    %c0_i32 = arith.constant 0 : i32
    return %arg1, %1 : i32, i32
  }
  func.func @transform_1(%arg0: i32, %arg1: i32, %arg2: i32) -> (i32, i32) {
    %c1_i32 = arith.constant 1 : i32
    %0 = arith.muli %arg0, %c1_i32 : i32
    %1 = arith.addi %0, %arg2 : i32
    %c0_i32 = arith.constant 0 : i32
    return %arg1, %1 : i32, i32
  }
  func.func @transform_2(%arg0: i32, %arg1: i32, %arg2: i32) -> (i32, i32, i32) {
    %c0_i32 = arith.constant 0 : i32
    %c0_i32_0 = arith.constant 0 : i32
    return %arg0, %arg1, %c0_i32 : i32, i32, i32
  }
}

</mosaic_0001>

<llo_original>
// kernel: tpu_custom_call.1
$region0: #{tpu_custom_call.1}
  #allocation0 [shape = 'u32[]', space=smem, size = 0x4, offset = 0x4, fixed_abs, tag = 'smem constant byte address 0x4 - core index']
  #allocation1 [shape = 'u32[72,128]{1,0:T(1,128)}', space=vmem, size = 0x9000, scoped, tag = 'internal scratch']
  #allocation2 [shape = 'f32[8,128]{1,0:T(8,128)}', space=vmem, size = 0x1000, scoped, tag = 'scratch operand']
  #allocation3 [shape = 'f32[8,128]{1,0:T(8,128)}', space=vmem, size = 0x1000, scoped, tag = 'scratch operand']
  %s0 = inlined_call_operand.hbm [shape: f32[8,256], index: 0, kind: input, shape index: {}]
  %s1 = inlined_call_operand.hbm [shape: f32[8,256], index: 1, kind: input, shape index: {}]
  %s2 = inlined_call_operand.vmem [shape: f32[1,8,2], index: 2, kind: output, shape index: {}]
  %s3 = sld [smem:[#allocation0]]
  $region34: #{tpu_custom_call.1} parent=0
    _
  %s5 = ssub.s32 1, %s3
  %s6 = scalar_select 0, %s5, %s3
  $region1: #{tpu_custom_call.1} parent=0
    #allocation4 [shape = 'u8[8192]{0}', space=vmem, size = 0x2000, scoped, tag = 'input window, operand 0, single buffered']
    #allocation5 [shape = 's32[1]{0}', space=sflag, size = 0x4, scoped, tag = 'scoped memory for tpu_custom_call.1']
    #allocation6 [shape = 'u8[8192]{0}', space=vmem, size = 0x2000, scoped, tag = 'input window, operand 1, single buffered']
    #allocation7 [shape = 's32[1]{0}', space=sflag, size = 0x4, scoped, tag = 'scoped memory for tpu_custom_call.1']
    %7 = vsyncpa [#allocation5], 0
    %8 = vsyncpa [#allocation7], 0
    // Predicated region
    $region2: #{tpu_custom_call.1} parent=1 // pred_check
      _
    $region3: #{tpu_custom_call.1} parent=1 // pred_check_branch
      %10 = sbr.rel (0) target = $region5
    $region4: #{tpu_custom_call.1} parent=1 // pred_region
      %s11 = sadd.s32 0, 0
      %s12 = smul.u32 2, %s11
      %14 = vsyncadd [#allocation5], 0
      %s15 = smul.addr %s12, 8
      %s16 = scalar_lea.hbm %s0, %s15
      %s18 = sshll.u32 %s16, 4
      %s19 = int_to_ptr.hbm [resolvable:$true] %s18
      %s20 = sshll.u32 [#allocation4], 4
      %s21 = int_to_ptr.vmem [resolvable:$true] %s20
      %23 = dma.hbm_to_vmem [thread:$0]  %s19, 256, %s21, [#allocation5]
    $region5: #{tpu_custom_call.1} parent=1 // pred_fallthru
      _
    // Predicated region
    $region6: #{tpu_custom_call.1} parent=1 // pred_check
      _
    $region7: #{tpu_custom_call.1} parent=1 // pred_check_branch
      %25 = sbr.rel (0) target = $region9
    $region8: #{tpu_custom_call.1} parent=1 // pred_region
      %s26 = sadd.s32 0, 0
      %s27 = smul.u32 2, %s26
      %29 = vsyncadd [#allocation7], 0
      %s30 = smul.addr %s27, 8
      %s31 = scalar_lea.hbm %s1, %s30
      %s33 = sshll.u32 %s31, 4
      %s34 = int_to_ptr.hbm [resolvable:$true] %s33
      %s35 = sshll.u32 [#allocation6], 4
      %s36 = int_to_ptr.vmem [resolvable:$true] %s35
      %38 = dma.hbm_to_vmem [thread:$0]  %s34, 256, %s36, [#allocation7]
    $region9: #{tpu_custom_call.1} parent=1 // pred_fallthru
      _
    // Predicated region
    $region10: #{tpu_custom_call.1} parent=1 // pred_check
      _
    $region11: #{tpu_custom_call.1} parent=1 // pred_check_branch
      %40 = sbr.rel (0) target = $region13
    $region12: #{tpu_custom_call.1} parent=1 // pred_region
      %42 = dma.done [#allocation5], 256
    $region13: #{tpu_custom_call.1} parent=1 // pred_fallthru
      _
    // Predicated region
    $region14: #{tpu_custom_call.1} parent=1 // pred_check
      _
    $region15: #{tpu_custom_call.1} parent=1 // pred_check_branch
      %44 = sbr.rel (0) target = $region17
    $region16: #{tpu_custom_call.1} parent=1 // pred_region
      %46 = dma.done [#allocation7], 256
    $region17: #{tpu_custom_call.1} parent=1 // pred_fallthru
      _
    %s47 = sadd.s32 0, 0
    %s48 = smul.u32 2, %s47
    %s49 = sadd.s32 0, 0
    %s50 = smul.u32 2, %s49
    %p51 = scmp.eq.s32.totalorder 0, 0
    // Predicated region
    $region18: #{tpu_custom_call.1} parent=1 // pred_check
      %p52 = pneg %p51
    $region19: #{tpu_custom_call.1} parent=1 // pred_check_branch
      %54 = sbr.rel (%p52) target = $region21
    $region20: #{tpu_custom_call.1} parent=1 // pred_region
      %55 = vst [vmem:[#allocation2] sm:$0xff] 0.0
      %56 = vst [vmem:[#allocation3] sm:$0xff] 0.0
    $region21: #{tpu_custom_call.1} parent=1 // pred_fallthru
      _
    %v57 = vld [vmem:[#allocation4] sm:$0xff]
    %v58 = vld [vmem:[#allocation4 + $0x8] sm:$0xff]
    %v59 = vld [vmem:[#allocation6] sm:$0xff]
    %v60 = vld [vmem:[#allocation6 + $0x8] sm:$0xff]
    %v61 = vmul.f32 %v57, %v59
    %v62 = vmul.f32 %v58, %v60
    %v63 = vmul.f32 %v57, %v57
    %v64 = vmul.f32 %v58, %v58
    %v65 = vmul.f32 %v59, %v59
    %v66 = vmul.f32 %v60, %v60
    %v67 = vadd.f32 %v63, %v65
    %v68 = vadd.f32 %v64, %v66
    %v69 = vld [vmem:[#allocation2] sm:$0xff]
    %v70 = vld [vmem:[#allocation3] sm:$0xff]
    %v71 = vadd.f32 %v69, %v61
    %v72 = vadd.f32 %v70, %v67
    %v73 = vadd.f32 %v71, %v62
    %v74 = vadd.f32 %v72, %v68
    %75 = vst [vmem:[#allocation2] sm:$0xff] %v73
    %76 = vst [vmem:[#allocation3] sm:$0xff] %v74
    // Predicated region
    $region22: #{tpu_custom_call.1} parent=1 // pred_check
      %p77 = pneg %p51
    $region23: #{tpu_custom_call.1} parent=1 // pred_check_branch
      %79 = sbr.rel (%p77) target = $region25
    $region24: #{tpu_custom_call.1} parent=1 // pred_region
      %v80 = vld [vmem:[#allocation2] sm:$0xff]
      %81 = vadd.xlane.f32.xlu0 %v80
      %v82 = vpop.xlane.xlu0 %81
      %vm83 = vcmask 7168
      %84 = vst.msk [vmem:[%s2] sm:$0xff] %vm83, %v82
      %v85 = vld [vmem:[#allocation3] sm:$0xff]
      %86 = vadd.xlane.f32.xlu0 %v85
      %v87 = vpop.xlane.xlu0 %86
      %vm88 = vcmask 15368
      %89 = vst.msk [vmem:[%s2] sm:$0xff] %vm88, %v87
    $region25: #{tpu_custom_call.1} parent=1 // pred_fallthru
      _
    // Predicated region
    $region26: #{tpu_custom_call.1} parent=1 // pred_check
      _
    $region27: #{tpu_custom_call.1} parent=1 // pred_check_branch
      %91 = sbr.rel (0) target = $region29
    $region28: #{tpu_custom_call.1} parent=1 // pred_region
      _
    $region29: #{tpu_custom_call.1} parent=1 // pred_fallthru
      _
    // Predicated region
    $region30: #{tpu_custom_call.1} parent=1 // pred_check
      _
    $region31: #{tpu_custom_call.1} parent=1 // pred_check_branch
      %93 = sbr.rel (0) target = $region33
    $region32: #{tpu_custom_call.1} parent=1 // pred_region
      _
    $region33: #{tpu_custom_call.1} parent=1 // pred_fallthru
      _
    %94 = vsyncpa [#allocation5], 1
    %95 = vsyncpa [#allocation7], 1

</llo_original>
